<compile_context>
chip_gen: v7x
topology: tpu7x:2x2x1
jax: 0.10.0
libtpu: 0.0.40
codegen_flags: <defaults>
</compile_context>

<pallas_src>
import math

import jax
import jax.numpy as jnp
from jax.experimental import pallas as pl
from jax.experimental.pallas import tpu as pltpu


def _pe_add_kernel(x_ref, pe_ref, o_ref):
    # x_ref/o_ref: (tile_b, tile_w) block of the flattened input/output.
    # pe_ref: (1, tile_w) positional-encoding tile, broadcast over batch.
    # Eval-mode dropout == identity.
    o_ref[...] = x_ref[...] + pe_ref[...]


def make_positional_encoding_table(d_model: int, seq_len: int,
                                   dtype=jnp.float32) -> jnp.ndarray:
    """Exactly mirrors PositionalEncoding.__init__ buffer construction."""
    assert d_model % 2 == 0, "module's pe construction requires even d_model"
    position = jnp.arange(seq_len, dtype=jnp.float32)[:, None]            # (S, 1)
    div_term = (jnp.exp(jnp.arange(0, d_model, 2, dtype=jnp.float32))
                / d_model * (-math.log(10000.0)))                         # (D/2,)
    angles = position * div_term                                          # (S, D/2)
    pe = jnp.zeros((seq_len, d_model), dtype=jnp.float32)
    pe = pe.at[:, 0::2].set(jnp.sin(angles))
    pe = pe.at[:, 1::2].set(jnp.cos(angles))
    return pe.astype(dtype)                                               # (S, D)


def _vmem_capacity_bytes() -> int:
    try:
        return int(pltpu.get_tpu_info().vmem_capacity_bytes)
    except Exception:
        return 64 * 1024 * 1024  # conservative (v7x per-TC)


def _choose_tiles(b: int, w: int, itemsize: int):
    """Pick (tile_b, tile_w) for the flattened (B, W) add.

    tile_b: full batch if small (legal block dim), else 256 (multiple of the
    packed sublane count for f32/bf16/int8). tile_w: multiple of 128 sized so
    the double-buffered footprint stays well under VMEM capacity, capped at
    ~4 MiB per input buffer (beyond that the HBM roofline is already reached).
    """
    tile_b = b if b <= 256 else 256

    cap = _vmem_capacity_bytes()
    budget = cap // 3  # leave headroom for the pipeline / compiler scratch
    # Per tile_w column: x + out, double-buffered (4 copies) + pe (2 copies).
    per_col = (4 * tile_b + 2) * itemsize
    max_w_budget = max(128, budget // per_col)
    max_w_perf = max(128, (4 * 1024 * 1024) // max(1, tile_b * itemsize))
    tile_w = min(w, max_w_budget, max_w_perf)
    tile_w = max(128, (tile_w // 128) * 128)
    if tile_w >= w:
        tile_w = w  # full-width block is always a legal block dim
    footprint = (4 * tile_b + 2) * tile_w * itemsize
    vmem_limit = int(min(cap * 7 // 8, max(2 * footprint, 16 * 1024 * 1024)))
    return tile_b, tile_w, vmem_limit


def positional_encoding_forward(x, pe, dropout_p: float = 0.0):
    """x: [B, T, D]; pe: [seq_len, D] buffer (T <= seq_len). Returns x + pe[:T].

    dropout_p is accepted for API parity; eval-mode dropout is the identity.
    """
    b, t, d = x.shape
    seq_len, d_model = pe.shape
    assert d_model == d and seq_len >= t

    if pe.dtype != x.dtype:
        pe = pe.astype(x.dtype)  # one-time cast; add happens in the input dtype

    w = t * d
    # Free row-major dim merges: lane-dense last dim, no data-dependent layout.
    x2 = x.reshape(b, w)
    pe2 = pe.reshape(1, seq_len * d)  # prefix of pe.ravel() == pe[:t].ravel()

    itemsize = jnp.dtype(x.dtype).itemsize
    tile_b, tile_w, vmem_limit = _choose_tiles(b, w, itemsize)
    grid = (pl.cdiv(w, tile_w), pl.cdiv(b, tile_b))  # batch is the inner axis

    out2 = pl.pallas_call(
        _pe_add_kernel,
        out_shape=jax.ShapeDtypeStruct((b, w), x.dtype),
        grid=grid,
        in_specs=[
            # x: block index depends on both axes.
            pl.BlockSpec((tile_b, tile_w), lambda wi, bi: (bi, wi)),
            # pe: block index constant across the inner batch axis -> the tile
            # stays resident in VMEM and is not re-DMA'd per batch block.
            pl.BlockSpec((1, tile_w), lambda wi, bi: (0, wi)),
        ],
        out_specs=pl.BlockSpec((tile_b, tile_w), lambda wi, bi: (bi, wi)),
        compiler_params=pltpu.CompilerParams(
            dimension_semantics=("parallel", "arbitrary"),
            vmem_limit_bytes=vmem_limit,
        ),
    )(x2, pe2)

    return out2.reshape(b, t, d)


if __name__ == "__main__":
    key = jax.random.PRNGKey(0)
    B, T, D = 2, 8, 32      # batch, seq, hidden
    SEQ_LEN = 16            # module's max seq_len (T <= SEQ_LEN)
    DROPOUT_P = 0.1         # eval mode -> identity

    x = jax.random.normal(key, (B, T, D), dtype=jnp.float32)
    pe = make_positional_encoding_table(D, SEQ_LEN, dtype=x.dtype)

    out = positional_encoding_forward(x, pe, DROPOUT_P)
    out = jax.block_until_ready(out)

    # Plain-JAX reference with identical semantics (eval-mode dropout).
    ref = x + pe[None, :T, :].astype(x.dtype)
    assert out.shape == (B, T, D)
    assert jnp.max(jnp.abs(out - ref)) < 1e-6

    print("KERNEL_OK")
</pallas_src>

<mosaic_0001>
module attributes {stable_mosaic.version = 11 : i64} {
  func.func @_pe_add_kernel(%arg0: i32, %arg1: i32, %arg2: memref<2x256xf32, #tpu.memory_space<vmem>>, %arg3: memref<1x256xf32, #tpu.memory_space<vmem>>, %arg4: memref<2x256xf32, #tpu.memory_space<vmem>>) attributes {dimension_semantics = [#tpu.dimension_semantics<parallel>, #tpu.dimension_semantics<arbitrary>], iteration_bounds = array<i64: 1, 1>, scalar_prefetch = 0 : i64, scratch_operands = 0 : i64, tpu.core_type = #tpu.core_type<tc>, window_params = [{transform_indices = @transform_0, window_bounds = array<i64: 2, 256>}, {transform_indices = @transform_1, window_bounds = array<i64: 1, 256>}, {transform_indices = @transform_2, window_bounds = array<i64: 2, 256>}]} {
    %c0 = arith.constant 0 : index
    %c0_0 = arith.constant 0 : index
    %0 = vector.load %arg2[%c0, %c0_0] : memref<2x256xf32, #tpu.memory_space<vmem>>, vector<2x256xf32>
    %c0_1 = arith.constant 0 : index
    %c0_2 = arith.constant 0 : index
    %1 = vector.load %arg3[%c0_1, %c0_2] : memref<1x256xf32, #tpu.memory_space<vmem>>, vector<1x256xf32>
    %2 = vector.broadcast %1 : vector<1x256xf32> to vector<2x256xf32>
    %3 = arith.addf %0, %2 : vector<2x256xf32>
    %c0_3 = arith.constant 0 : index
    %c0_4 = arith.constant 0 : index
    %4 = vector.load %arg4[%c0_3, %c0_4] : memref<2x256xf32, #tpu.memory_space<vmem>>, vector<2x256xf32>
    tpu.vector_store %arg4[%c0_3, %c0_4], %3 {strides = array<i32>} : memref<2x256xf32, #tpu.memory_space<vmem>>, vector<2x256xf32>,
    return
  }
  func.func @transform_0(%arg0: i32, %arg1: i32) -> (i32, i32) {
    %c0_i32 = arith.constant 0 : i32
    return %arg1, %arg0 : i32, i32
  }
  func.func @transform_1(%arg0: i32, %arg1: i32) -> (i32, i32) {
    %c0_i32 = arith.constant 0 : i32
    %c0_i32_0 = arith.constant 0 : i32
    return %c0_i32, %arg0 : i32, i32
  }
  func.func @transform_2(%arg0: i32, %arg1: i32) -> (i32, i32) {
    %c0_i32 = arith.constant 0 : i32
    return %arg1, %arg0 : i32, i32
  }
}

</mosaic_0001>

<llo_original>
// kernel: tpu_custom_call.1
$region0: #{tpu_custom_call.1}
  #allocation0 [shape = 'u32[]', space=smem, size = 0x4, offset = 0x4, fixed_abs, tag = 'smem constant byte address 0x4 - core index']
  #allocation1 [shape = 'u32[144,128]{1,0:T(1,128)}', space=vmem, size = 0x12000, scoped, tag = 'internal scratch']
  %s0 = inlined_call_operand.hbm [shape: f32[2,256], index: 0, kind: input, shape index: {}]
  %s1 = inlined_call_operand.hbm [shape: f32[1,512], index: 1, kind: input, shape index: {}]
  %s2 = inlined_call_operand.hbm [shape: f32[2,256], index: 2, kind: output, shape index: {}]
  %s3 = sld [smem:[#allocation0]]
  $region26: #{tpu_custom_call.1} parent=0
    _
  %s5 = ssub.s32 1, %s3
  %s6 = scalar_select 0, %s5, %s3
  $region1: #{tpu_custom_call.1} parent=0
    #allocation2 [shape = 'u8[2048]{0}', space=vmem, size = 0x800, scoped, tag = 'input window, operand 0, single buffered']
    #allocation3 [shape = 's32[1]{0}', space=sflag, size = 0x4, scoped, tag = 'scoped memory for tpu_custom_call.1']
    #allocation4 [shape = 's32[1]{0}', space=sflag, size = 0x4, scoped, tag = 'scoped memory for tpu_custom_call.1']
    #allocation5 [shape = 'u8[1024]{0}', space=vmem, size = 0x400, scoped, tag = 'input window, operand 1, single buffered']
    #allocation6 [shape = 's32[1]{0}', space=sflag, size = 0x4, scoped, tag = 'scoped memory for tpu_custom_call.1']
    #allocation7 [shape = 'u8[2048]{0}', space=vmem, size = 0x800, scoped, tag = 'output window, operand 0, single buffered']
    %7 = vsyncpa [#allocation3], 0
    %8 = vsyncpa [#allocation6], 0
    %9 = vsyncpa [#allocation4], 0
    // Predicated region
    $region2: #{tpu_custom_call.1} parent=1 // pred_check
      _
    $region3: #{tpu_custom_call.1} parent=1 // pred_check_branch
      %11 = sbr.rel (0) target = $region5
    $region4: #{tpu_custom_call.1} parent=1 // pred_region
      %s13 = ssub.s32 64, 64
      %14 = vsyncadd [#allocation3], %s13
      %s16 = sshll.u32 [#allocation2], 4
      %s17 = int_to_ptr.vmem [resolvable:$true] %s16
      %19 = dma.hbm_to_vmem [thread:$0]  %s0, 64, %s17, [#allocation3]
    $region5: #{tpu_custom_call.1} parent=1 // pred_fallthru
      _
    // Predicated region
    $region6: #{tpu_custom_call.1} parent=1 // pred_check
      _
    $region7: #{tpu_custom_call.1} parent=1 // pred_check_branch
      %21 = sbr.rel (0) target = $region9
    $region8: #{tpu_custom_call.1} parent=1 // pred_region
      %s23 = ssub.s32 32, 32
      %24 = vsyncadd [#allocation6], %s23
      %s26 = sshll.u32 [#allocation5], 4
      %s27 = int_to_ptr.vmem [resolvable:$true] %s26
      %29 = dma.hbm_to_vmem [thread:$0]  %s1, 32, %s27, [#allocation6]
    $region9: #{tpu_custom_call.1} parent=1 // pred_fallthru
      _
    // Predicated region
    $region10: #{tpu_custom_call.1} parent=1 // pred_check
      _
    $region11: #{tpu_custom_call.1} parent=1 // pred_check_branch
      %31 = sbr.rel (0) target = $region13
    $region12: #{tpu_custom_call.1} parent=1 // pred_region
      %32 = dma.done [#allocation3], 64
    $region13: #{tpu_custom_call.1} parent=1 // pred_fallthru
      _
    // Predicated region
    $region14: #{tpu_custom_call.1} parent=1 // pred_check
      _
    $region15: #{tpu_custom_call.1} parent=1 // pred_check_branch
      %34 = sbr.rel (0) target = $region17
    $region16: #{tpu_custom_call.1} parent=1 // pred_region
      %35 = dma.done [#allocation6], 32
    $region17: #{tpu_custom_call.1} parent=1 // pred_fallthru
      _
    %v36 = vld [vmem:[#allocation2] sm:$0xf]
    %v37 = vld [vmem:[#allocation5] sm:$0x3]
    %v39 = vlaneseq
    %v40 = vshrl.u32 %v39, 7
    %v41 = vsub.s32 0, %v40
    %v42 = vrot.slane %v37, %v41
    %v43 = vlaneseq
    %v44 = vshrl.u32 %v43, 7
    %v45 = vsub.s32 1, %v44
    %v46 = vrot.slane %v37, %v45
    %v47 = vcombine.low %v42, %v46
    %v49 = vunpack.c.l.s4 1983009808
    %v50 = vunpack.c.0.s8 %v49
    %v51 = vlaneseq
    %v52 = vshrl.u32 %v51, 7
    %v53 = vsub.s32 %v50, %v52
    %v54 = vrot.slane %v47, %v53
    %v56 = vadd.f32 %v36, %v54
    %57 = vst [vmem:[#allocation7] sm:$0xf] %v56
    // Predicated region
    $region18: #{tpu_custom_call.1} parent=1 // pred_check
      _
    $region19: #{tpu_custom_call.1} parent=1 // pred_check_branch
      %59 = sbr.rel (0) target = $region21
    $region20: #{tpu_custom_call.1} parent=1 // pred_region
      %s61 = ssub.s32 64, 64
      %62 = vsyncadd [#allocation4], %s61
      %s64 = sshll.u32 [#allocation7], 4
      %s65 = int_to_ptr.vmem [resolvable:$true] %s64
      %67 = dma.vmem_to_hbm [thread:$0]  %s65, 64, %s2, [#allocation4]
    $region21: #{tpu_custom_call.1} parent=1 // pred_fallthru
      _
    // Predicated region
    $region22: #{tpu_custom_call.1} parent=1 // pred_check
      _
    $region23: #{tpu_custom_call.1} parent=1 // pred_check_branch
      %69 = sbr.rel (0) target = $region25
    $region24: #{tpu_custom_call.1} parent=1 // pred_region
      %70 = dma.done [#allocation4], 64
    $region25: #{tpu_custom_call.1} parent=1 // pred_fallthru
      _
    %71 = vsyncpa [#allocation3], 1
    %72 = vsyncpa [#allocation6], 1
    %73 = vsyncpa [#allocation4], 1

</llo_original>
